<compile_context>
chip_gen: v5e
topology: v5e:2x2
jax: 0.10.0
libtpu: 0.0.40
codegen_flags: <defaults>
</compile_context>

<pallas_src>
import functools

import jax
import jax.numpy as jnp
from jax.experimental import pallas as pl
from jax.experimental.pallas import tpu as pltpu


def _round_up(x, m):
    return (x + m - 1) // m * m


def _policy_kernel(x_ref, w1_ref, w2_ref, w3_ref, b_ref, mean_ref, *,
                   hidden, head):
    # Biases are row-packed f32 (3, bias_w): sublane slices at lane offset 0
    # are cheap (no lane shifts); bias + ReLU stay in f32 on every generation.
    b1 = b_ref[0:1, :hidden]
    b2 = b_ref[1:2, :hidden]
    b3 = b_ref[2:3, :head]

    # fc[0]: Linear(obs_dim, hidden) + ReLU   (MXU matmul, f32 accumulation)
    h1 = jnp.dot(x_ref[...], w1_ref[...],
                 preferred_element_type=jnp.float32) + b1
    h1 = jnp.maximum(h1, 0.0)

    # fc[2]: Linear(hidden, hidden) + ReLU
    h2 = jnp.dot(h1.astype(w2_ref.dtype), w2_ref[...],
                 preferred_element_type=jnp.float32) + b2
    h2 = jnp.maximum(h2, 0.0)

    # mean head: Linear(hidden, act_dim), zero-padded to `head` (=128) lanes
    # so the output store is an unmasked, lane-dense vst.
    mean = jnp.dot(h2.astype(w3_ref.dtype), w3_ref[...],
                   preferred_element_type=jnp.float32) + b3
    mean_ref[...] = mean.astype(mean_ref.dtype)


def gaussian_policy_forward(x, params, *, tile_b=1024, use_bf16=True):
    """Returns (mean [B, act_dim], std [act_dim]) like the PyTorch module.

    tile_b:   batch rows per grid step.  1024 is safe on all generations
              (~2 MB live VMEM/step); sweep up to ~4096 on v5e (16 MiB scoped
              default) and ~8192 on v6e/v7x for very large rollout batches.
    use_bf16: stream x / hold weights in bf16 (f32 MXU accumulation, f32
              bias+ReLU).  Set False for bit-exact f32.
    """
    w1, b1, w2, b2, w3, b3, log_std = params
    B, obs_dim = x.shape
    hidden = w1.shape[1]
    act_dim = w3.shape[1]

    # std = exp(log_std) is input-independent: compute once in the wrapper.
    std = jnp.exp(log_std)

    # --- one-time (tiny) parameter repacking --------------------------------
    head = _round_up(act_dim, 128)                 # lane-dense output width
    w3p = jnp.pad(w3, ((0, 0), (0, head - act_dim)))
    bias_w = _round_up(max(hidden, head), 128)
    bias_rows = jnp.zeros((3, bias_w), jnp.float32)
    bias_rows = bias_rows.at[0, :hidden].set(b1.astype(jnp.float32))
    bias_rows = bias_rows.at[1, :hidden].set(b2.astype(jnp.float32))
    bias_rows = bias_rows.at[2, :act_dim].set(b3.astype(jnp.float32))

    if use_bf16:
        xk = x.astype(jnp.bfloat16)
        w1k = w1.astype(jnp.bfloat16)
        w2k = w2.astype(jnp.bfloat16)
        w3k = w3p.astype(jnp.bfloat16)
    else:
        xk, w1k, w2k, w3k = x, w1, w2, w3p

    # --- batch tiling: no jnp.pad(x) / mean[:B] HBM copies ------------------
    # Mosaic pads the ragged last input block and drops out-of-bounds output
    # rows, so B need not be a multiple of tb.
    g = 16 if use_bf16 else 8          # sublane granularity (bf16 packs 16)
    tb = min(tile_b, _round_up(B, g))
    if B > 2 * g and pl.cdiv(B, tb) < 2:
        # Keep >=2 grid steps so both v7x TensorCores get work ("parallel"
        # batch axis); one extra ~0.35us step on single-core v5e/v6e.
        tb = _round_up(pl.cdiv(B, 2), g)
    grid = (pl.cdiv(B, tb),)

    flops = 2 * B * (obs_dim * hidden + hidden * hidden + hidden * act_dim)
    bytes_accessed = (
        xk.dtype.itemsize * B * obs_dim                                # x in
        + 4 * B * head                                                 # mean out
        + w1k.dtype.itemsize * (obs_dim * hidden + hidden * hidden
                                + hidden * head)                       # weights
        + 4 * 3 * bias_w)                                              # biases
    cost = pl.CostEstimate(flops=flops, transcendentals=0,
                           bytes_accessed=bytes_accessed)

    kernel = functools.partial(_policy_kernel, hidden=hidden, head=head)

    mean_p = pl.pallas_call(
        kernel,
        out_shape=jax.ShapeDtypeStruct((B, head), jnp.float32),
        grid=grid,
        in_specs=[
            pl.BlockSpec((tb, obs_dim), lambda i: (i, 0)),       # x tile
            pl.BlockSpec((obs_dim, hidden), lambda i: (0, 0)),   # w1 (resident)
            pl.BlockSpec((hidden, hidden), lambda i: (0, 0)),    # w2 (resident)
            pl.BlockSpec((hidden, head), lambda i: (0, 0)),      # w3 padded (resident)
            pl.BlockSpec((3, bias_w), lambda i: (0, 0)),         # row-packed biases
        ],
        out_specs=pl.BlockSpec((tb, head), lambda i: (i, 0)),
        compiler_params=pltpu.CompilerParams(
            dimension_semantics=("parallel",)),
        cost_estimate=cost,
    )(xk, w1k, w2k, w3k, bias_rows)

    # Tiny slice back to the module's (B, act_dim) interface; callers that can
    # consume the 128-lane-padded mean directly (or fuse under jit) skip it.
    mean = mean_p[:, :act_dim]
    return mean, std


def init_params(key, obs_dim, act_dim, hidden=64):
    """Deterministic synthetic init (uniform fan-in scaling, like nn.Linear)."""
    keys = jax.random.split(key, 6)

    def linear(kw, kb, fan_in, fan_out):
        bound = 1.0 / jnp.sqrt(fan_in)
        w = jax.random.uniform(kw, (fan_in, fan_out), jnp.float32, -bound, bound)
        b = jax.random.uniform(kb, (fan_out,), jnp.float32, -bound, bound)
        return w, b

    w1, b1 = linear(keys[0], keys[1], obs_dim, hidden)
    w2, b2 = linear(keys[2], keys[3], hidden, hidden)
    w3, b3 = linear(keys[4], keys[5], hidden, act_dim)
    log_std = jnp.zeros((act_dim,), jnp.float32)  # nn.Parameter(torch.zeros(act_dim))
    return (w1, b1, w2, b2, w3, b3, log_std)


def _reference(x, params):
    w1, b1, w2, b2, w3, b3, log_std = params
    h = jnp.maximum(x @ w1 + b1, 0.0)
    h = jnp.maximum(h @ w2 + b2, 0.0)
    return h @ w3 + b3, jnp.exp(log_std)


if __name__ == "__main__":
    key = jax.random.PRNGKey(0)
    obs_dim, act_dim = 8, 4

    k_x, k_p, k_x2 = jax.random.split(key, 3)
    params = init_params(k_p, obs_dim, act_dim)

    # Small batch (single ragged block: 2 rows inside one tile).
    x = jax.random.normal(k_x, (2, obs_dim), jnp.float32)
    ref_mean, ref_std = _reference(x, params)

    # Exact f32 path.
    mean, std = gaussian_policy_forward(x, params, use_bf16=False)
    jax.block_until_ready((mean, std))
    assert mean.shape == (2, act_dim)
    assert std.shape == (act_dim,)
    assert jnp.allclose(mean, ref_mean, atol=1e-5, rtol=1e-5)
    assert jnp.allclose(std, ref_std, atol=1e-6, rtol=1e-6)

    # Default bf16-streaming path (halves HBM bytes on the x stream).
    mean16, std16 = gaussian_policy_forward(x, params)
    jax.block_until_ready((mean16, std16))
    assert jnp.allclose(mean16, ref_mean, atol=3e-2, rtol=3e-2)
    assert jnp.allclose(std16, ref_std, atol=1e-6, rtol=1e-6)

    # Larger, non-divisible batch: multi-step grid + ragged last block with no
    # wrapper-side pad/slice copies of x or mean.
    x2 = jax.random.normal(k_x2, (300, obs_dim), jnp.float32)
    ref2, _ = _reference(x2, params)
    mean2, _ = gaussian_policy_forward(x2, params, use_bf16=False)
    jax.block_until_ready(mean2)
    assert mean2.shape == (300, act_dim)
    assert jnp.allclose(mean2, ref2, atol=1e-4, rtol=1e-4)

    print("KERNEL_OK")
</pallas_src>

<mosaic_0001>
module attributes {stable_mosaic.version = 11 : i64} {
  func.func @_policy_kernel(%arg0: i32, %arg1: memref<8x8xf32, #tpu.memory_space<vmem>>, %arg2: memref<8x64xf32, #tpu.memory_space<vmem>>, %arg3: memref<64x64xf32, #tpu.memory_space<vmem>>, %arg4: memref<64x128xf32, #tpu.memory_space<vmem>>, %arg5: memref<3x128xf32, #tpu.memory_space<vmem>>, %arg6: memref<8x128xf32, #tpu.memory_space<vmem>>) attributes {dimension_semantics = [#tpu.dimension_semantics<parallel>], iteration_bounds = array<i64: 1>, scalar_prefetch = 0 : i64, scratch_operands = 0 : i64, tpu.core_type = #tpu.core_type<tc>, window_params = [{transform_indices = @transform_0, window_bounds = array<i64: 8, 8>}, {pipeline_mode = #tpu.pipeline_mode<synchronous>, transform_indices = @transform_1, window_bounds = array<i64: 8, 64>}, {pipeline_mode = #tpu.pipeline_mode<synchronous>, transform_indices = @transform_2, window_bounds = array<i64: 64, 64>}, {pipeline_mode = #tpu.pipeline_mode<synchronous>, transform_indices = @transform_3, window_bounds = array<i64: 64, 128>}, {pipeline_mode = #tpu.pipeline_mode<synchronous>, transform_indices = @transform_4, window_bounds = array<i64: 3, 128>}, {transform_indices = @transform_5, window_bounds = array<i64: 8, 128>}]} {
    %c0 = arith.constant 0 : index
    %c0_0 = arith.constant 0 : index
    %0 = vector.load %arg5[%c0, %c0_0] : memref<3x128xf32, #tpu.memory_space<vmem>>, vector<1x64xf32>
    %c1 = arith.constant 1 : index
    %c0_1 = arith.constant 0 : index
    %1 = vector.load %arg5[%c1, %c0_1] : memref<3x128xf32, #tpu.memory_space<vmem>>, vector<1x64xf32>
    %c2 = arith.constant 2 : index
    %c0_2 = arith.constant 0 : index
    %2 = vector.load %arg5[%c2, %c0_2] : memref<3x128xf32, #tpu.memory_space<vmem>>, vector<1x128xf32>
    %c0_3 = arith.constant 0 : index
    %c0_4 = arith.constant 0 : index
    %3 = vector.load %arg1[%c0_3, %c0_4] : memref<8x8xf32, #tpu.memory_space<vmem>>, vector<8x8xf32>
    %c0_5 = arith.constant 0 : index
    %c0_6 = arith.constant 0 : index
    %4 = vector.load %arg2[%c0_5, %c0_6] : memref<8x64xf32, #tpu.memory_space<vmem>>, vector<8x64xf32>
    %cst = arith.constant dense<0.000000e+00> : vector<8x64xf32>
    %5 = tpu.matmul %3, %4, %cst {dimension_numbers = #tpu.dot_dimension_numbers<[1], [0], [0], [1], [0, 0, 1, 1], [], []>} : vector<8x8xf32>, vector<8x64xf32>, vector<8x64xf32> -> vector<8x64xf32>
    %6 = vector.broadcast %0 : vector<1x64xf32> to vector<8x64xf32>
    %7 = arith.addf %5, %6 : vector<8x64xf32>
    %cst_7 = arith.constant 0.000000e+00 : f32
    %8 = vector.broadcast %cst_7 : f32 to vector<8x64xf32>
    %9 = arith.maximumf %7, %8 : vector<8x64xf32>
    %c0_8 = arith.constant 0 : index
    %c0_9 = arith.constant 0 : index
    %10 = vector.load %arg3[%c0_8, %c0_9] : memref<64x64xf32, #tpu.memory_space<vmem>>, vector<64x64xf32>
    %cst_10 = arith.constant dense<0.000000e+00> : vector<8x64xf32>
    %11 = tpu.matmul %9, %10, %cst_10 {dimension_numbers = #tpu.dot_dimension_numbers<[1], [0], [0], [1], [0, 0, 1, 1], [], []>} : vector<8x64xf32>, vector<64x64xf32>, vector<8x64xf32> -> vector<8x64xf32>
    %12 = vector.broadcast %1 : vector<1x64xf32> to vector<8x64xf32>
    %13 = arith.addf %11, %12 : vector<8x64xf32>
    %cst_11 = arith.constant 0.000000e+00 : f32
    %14 = vector.broadcast %cst_11 : f32 to vector<8x64xf32>
    %15 = arith.maximumf %13, %14 : vector<8x64xf32>
    %c0_12 = arith.constant 0 : index
    %c0_13 = arith.constant 0 : index
    %16 = vector.load %arg4[%c0_12, %c0_13] : memref<64x128xf32, #tpu.memory_space<vmem>>, vector<64x128xf32>
    %cst_14 = arith.constant dense<0.000000e+00> : vector<8x128xf32>
    %17 = tpu.matmul %15, %16, %cst_14 {dimension_numbers = #tpu.dot_dimension_numbers<[1], [0], [0], [1], [0, 0, 1, 1], [], []>} : vector<8x64xf32>, vector<64x128xf32>, vector<8x128xf32> -> vector<8x128xf32>
    %18 = vector.broadcast %2 : vector<1x128xf32> to vector<8x128xf32>
    %19 = arith.addf %17, %18 : vector<8x128xf32>
    %c0_15 = arith.constant 0 : index
    %c0_16 = arith.constant 0 : index
    %20 = vector.load %arg6[%c0_15, %c0_16] : memref<8x128xf32, #tpu.memory_space<vmem>>, vector<8x128xf32>
    tpu.vector_store %arg6[%c0_15, %c0_16], %19 {strides = array<i32>} : memref<8x128xf32, #tpu.memory_space<vmem>>, vector<8x128xf32>,
    return
  }
  func.func @transform_0(%arg0: i32) -> (i32, i32) {
    %c0_i32 = arith.constant 0 : i32
    %c0_i32_0 = arith.constant 0 : i32
    return %arg0, %c0_i32 : i32, i32
  }
  func.func @transform_1(%arg0: i32) -> (i32, i32) {
    %c0_i32 = arith.constant 0 : i32
    %c0_i32_0 = arith.constant 0 : i32
    %c0_i32_1 = arith.constant 0 : i32
    return %c0_i32, %c0_i32_0 : i32, i32
  }
  func.func @transform_2(%arg0: i32) -> (i32, i32) {
    %c0_i32 = arith.constant 0 : i32
    %c0_i32_0 = arith.constant 0 : i32
    %c0_i32_1 = arith.constant 0 : i32
    return %c0_i32, %c0_i32_0 : i32, i32
  }
  func.func @transform_3(%arg0: i32) -> (i32, i32) {
    %c0_i32 = arith.constant 0 : i32
    %c0_i32_0 = arith.constant 0 : i32
    %c0_i32_1 = arith.constant 0 : i32
    return %c0_i32, %c0_i32_0 : i32, i32
  }
  func.func @transform_4(%arg0: i32) -> (i32, i32) {
    %c0_i32 = arith.constant 0 : i32
    %c0_i32_0 = arith.constant 0 : i32
    %c0_i32_1 = arith.constant 0 : i32
    return %c0_i32, %c0_i32_0 : i32, i32
  }
  func.func @transform_5(%arg0: i32) -> (i32, i32) {
    %c0_i32 = arith.constant 0 : i32
    %c0_i32_0 = arith.constant 0 : i32
    return %arg0, %c0_i32 : i32, i32
  }
}

</mosaic_0001>

<llo_original>
// kernel: tpu_custom_call.1
$region0: #{tpu_custom_call.1}
  #allocation0 [shape = 'u32[]', space=smem, size = 0x4, offset = 0x4, fixed_abs, tag = 'smem constant byte address 0x4 - core index']
  #allocation1 [shape = 'u32[72,128]{1,0:T(1,128)}', space=vmem, size = 0x9000, scoped, tag = 'internal scratch']
  %s0 = inlined_call_operand.hbm [shape: f32[2,8], index: 0, kind: input, shape index: {}]
  %s1 = inlined_call_operand.hbm [shape: f32[8,64], index: 1, kind: input, shape index: {}]
  %s2 = inlined_call_operand.hbm [shape: f32[64,64], index: 2, kind: input, shape index: {}]
  %s3 = inlined_call_operand.hbm [shape: f32[64,128], index: 3, kind: input, shape index: {}]
  %s4 = inlined_call_operand.hbm [shape: f32[3,128], index: 4, kind: input, shape index: {}]
  %s5 = inlined_call_operand.hbm [shape: f32[2,128], index: 5, kind: output, shape index: {}]
  %s6 = sld [smem:[#allocation0]]
  $region50: #{tpu_custom_call.1} parent=0
    _
  %s8 = ssub.s32 1, %s6
  %s9 = scalar_select 0, %s8, %s6
  $region1: #{tpu_custom_call.1} parent=0
    #allocation2 [shape = 'u8[4096]{0}', space=vmem, size = 0x1000, scoped, tag = 'input window, operand 0, single buffered']
    #allocation3 [shape = 's32[1]{0}', space=sflag, size = 0x4, scoped, tag = 'scoped memory for tpu_custom_call.1']
    #allocation4 [shape = 's32[1]{0}', space=sflag, size = 0x4, scoped, tag = 'scoped memory for tpu_custom_call.1']
    #allocation5 [shape = 'u8[4096]{0}', space=vmem, size = 0x1000, scoped, tag = 'input window, operand 1, single buffered']
    #allocation6 [shape = 's32[1]{0}', space=sflag, size = 0x4, scoped, tag = 'scoped memory for tpu_custom_call.1']
    #allocation7 [shape = 'u8[32768]{0}', space=vmem, size = 0x8000, scoped, tag = 'input window, operand 2, single buffered']
    #allocation8 [shape = 'u8[32768]{0}', space=vmem, size = 0x8000, scoped, tag = 'input window, operand 3, single buffered']
    #allocation9 [shape = 's32[1]{0}', space=sflag, size = 0x4, scoped, tag = 'scoped memory for tpu_custom_call.1']
    #allocation10 [shape = 'u8[2048]{0}', space=vmem, size = 0x800, scoped, tag = 'input window, operand 4, single buffered']
    #allocation11 [shape = 'u8[4096]{0}', space=vmem, size = 0x1000, scoped, tag = 'output window, operand 0, single buffered']
    %10 = vsyncpa [#allocation3], 0
    %11 = vsyncpa [#allocation6], 0
    %12 = vsyncpa [#allocation9], 0
    %13 = vsyncpa [#allocation4], 0
    // Predicated region
    $region2: #{tpu_custom_call.1} parent=1 // pred_check
      _
    $region3: #{tpu_custom_call.1} parent=1 // pred_check_branch
      %15 = sbr.rel (0) target = $region5
    $region4: #{tpu_custom_call.1} parent=1 // pred_region
      %17 = vsyncadd [#allocation3], 96
      %s18 = sshll.u32 %s0, 4
      %s19 = int_to_ptr.hbm [resolvable:$true] %s18
      %s20 = sshll.u32 [#allocation2], 4
      %s21 = int_to_ptr.vmem [resolvable:$true] %s20
      %26 = dma.hbm_to_vmem [thread:$0]  %s19, 32, %s21, [#allocation3], 32, 32, 2
    $region5: #{tpu_custom_call.1} parent=1 // pred_fallthru
      _
    // Predicated region
    $region6: #{tpu_custom_call.1} parent=1 // pred_check
      _
    $region7: #{tpu_custom_call.1} parent=1 // pred_check_branch
      %28 = sbr.rel (0) target = $region9
    $region8: #{tpu_custom_call.1} parent=1 // pred_region
      %30 = vsyncadd [#allocation6], 0
      %s32 = sshll.u32 %s1, 4
      %s33 = int_to_ptr.hbm [resolvable:$true] %s32
      %s34 = sshll.u32 [#allocation5], 4
      %s35 = int_to_ptr.vmem [resolvable:$true] %s34
      %37 = dma.hbm_to_vmem [thread:$0]  %s33, 128, %s35, [#allocation6]
    $region9: #{tpu_custom_call.1} parent=1 // pred_fallthru
      _
    // Predicated region
    $region10: #{tpu_custom_call.1} parent=1 // pred_check
      _
    $region11: #{tpu_custom_call.1} parent=1 // pred_check_branch
      %39 = sbr.rel (0) target = $region13
    $region12: #{tpu_custom_call.1} parent=1 // pred_region
      %41 = vsyncadd [#allocation6], 0
      %s42 = sshll.u32 %s2, 4
      %s43 = int_to_ptr.hbm [resolvable:$true] %s42
      %s44 = sshll.u32 [#allocation7], 4
      %s45 = int_to_ptr.vmem [resolvable:$true] %s44
      %50 = dma.hbm_to_vmem [thread:$0]  %s43, 1024, %s45, [#allocation6], 128, 128, 8
    $region13: #{tpu_custom_call.1} parent=1 // pred_fallthru
      _
    // Predicated region
    $region14: #{tpu_custom_call.1} parent=1 // pred_check
      _
    $region15: #{tpu_custom_call.1} parent=1 // pred_check_branch
      %52 = sbr.rel (0) target = $region17
    $region16: #{tpu_custom_call.1} parent=1 // pred_region
      %54 = vsyncadd [#allocation9], 0
      %s55 = sshll.u32 %s3, 4
      %s56 = int_to_ptr.hbm [resolvable:$true] %s55
      %s57 = sshll.u32 [#allocation8], 4
      %s58 = int_to_ptr.vmem [resolvable:$true] %s57
      %63 = dma.hbm_to_vmem [thread:$0]  %s56, 1024, %s58, [#allocation9], 128, 128, 8
    $region17: #{tpu_custom_call.1} parent=1 // pred_fallthru
      _
    // Predicated region
    $region18: #{tpu_custom_call.1} parent=1 // pred_check
      _
    $region19: #{tpu_custom_call.1} parent=1 // pred_check_branch
      %65 = sbr.rel (0) target = $region21
    $region20: #{tpu_custom_call.1} parent=1 // pred_region
      %67 = vsyncadd [#allocation9], 0
      %s69 = sshll.u32 %s4, 4
      %s70 = int_to_ptr.hbm [resolvable:$true] %s69
      %s71 = sshll.u32 [#allocation10], 4
      %s72 = int_to_ptr.vmem [resolvable:$true] %s71
      %74 = dma.hbm_to_vmem [thread:$0]  %s70, 64, %s72, [#allocation9]
    $region21: #{tpu_custom_call.1} parent=1 // pred_fallthru
      _
    // Predicated region
    $region22: #{tpu_custom_call.1} parent=1 // pred_check
      _
    $region23: #{tpu_custom_call.1} parent=1 // pred_check_branch
      %76 = sbr.rel (0) target = $region25
    $region24: #{tpu_custom_call.1} parent=1 // pred_region
      %78 = dma.done [#allocation3], 128
    $region25: #{tpu_custom_call.1} parent=1 // pred_fallthru
      _
    // Predicated region
    $region26: #{tpu_custom_call.1} parent=1 // pred_check
      _
    $region27: #{tpu_custom_call.1} parent=1 // pred_check_branch
      %80 = sbr.rel (0) target = $region29
    $region28: #{tpu_custom_call.1} parent=1 // pred_region
      %82 = dma.done [#allocation6], 128
    $region29: #{tpu_custom_call.1} parent=1 // pred_fallthru
      _
    // Predicated region
    $region30: #{tpu_custom_call.1} parent=1 // pred_check
      _
    $region31: #{tpu_custom_call.1} parent=1 // pred_check_branch
      %84 = sbr.rel (0) target = $region33
    $region32: #{tpu_custom_call.1} parent=1 // pred_region
      %86 = dma.done [#allocation6], 1024
    $region33: #{tpu_custom_call.1} parent=1 // pred_fallthru
      _
    // Predicated region
    $region34: #{tpu_custom_call.1} parent=1 // pred_check
      _
    $region35: #{tpu_custom_call.1} parent=1 // pred_check_branch
      %88 = sbr.rel (0) target = $region37
    $region36: #{tpu_custom_call.1} parent=1 // pred_region
      %90 = dma.done [#allocation9], 1024
    $region37: #{tpu_custom_call.1} parent=1 // pred_fallthru
      _
    // Predicated region
    $region38: #{tpu_custom_call.1} parent=1 // pred_check
      _
    $region39: #{tpu_custom_call.1} parent=1 // pred_check_branch
      %92 = sbr.rel (0) target = $region41
    $region40: #{tpu_custom_call.1} parent=1 // pred_region
      %94 = dma.done [#allocation9], 64
    $region41: #{tpu_custom_call.1} parent=1 // pred_fallthru
      _
    %v95 = vld [vmem:[#allocation10] sm:$0x1]
    %v96 = vld [vmem:[#allocation10 + $0x1] sm:$0x1]
    %v97 = vld [vmem:[#allocation10 + $0x2] sm:$0x1]
    %v98 = vld [vmem:[#allocation2] sm:$0xff]
    %v99 = vld [vmem:[#allocation5] sm:$0xff]
    %v100 = vperm.slane %v95, 0
    %vm101 = vcmask 64512
    %v103 = vsel %vm101, %v98, 0
    %105 = vmatpush.msra.mxu0 0.0
    %106 = vmatpush.msra.mxu0 0.0
    %107 = vmatpush.msra.mxu0 0.0
    %108 = vmatpush.msra.mxu0 0.0
    %109 = vmatpush.msra.mxu0 0.0
    %110 = vmatpush.msra.mxu0 0.0
    %111 = vmatpush.msra.mxu0 0.0
    %112 = vmatpush.msra.mxu0 0.0
    %113 = vmatpush.msra.mxu0 0.0
    %114 = vmatpush.msra.mxu0 0.0
    %115 = vmatpush.msra.mxu0 0.0
    %116 = vmatpush.msra.mxu0 0.0
    %117 = vmatpush.msra.mxu0 0.0
    %118 = vmatpush.msra.mxu0 0.0
    %119 = vmatpush.msra.mxu0 0.0
    %120 = vmatpush.msra.mxu0 %v99
    %121 = vmatmul.f32.gmra.mxu0 %v103
    %v122 = vpop.f32.mrf.mxu0
    %v123 = vadd.f32 %v100, %v122
    %124 = vdwg.mxu0
    %v125 = vmax.f32 %v123, 0.0
    %v126 = vld [vmem:[#allocation7] sm:$0xff]
    %v127 = vld [vmem:[#allocation7 + $0x8] sm:$0xff]
    %v128 = vld [vmem:[#allocation7 + $0x10] sm:$0xff]
    %v129 = vld [vmem:[#allocation7 + $0x18] sm:$0xff]
    %v130 = vld [vmem:[#allocation7 + $0x20] sm:$0xff]
    %v131 = vld [vmem:[#allocation7 + $0x28] sm:$0xff]
    %v132 = vld [vmem:[#allocation7 + $0x30] sm:$0xff]
    %v133 = vld [vmem:[#allocation7 + $0x38] sm:$0xff]
    %v134 = vperm.slane %v96, 0
    %vm135 = vcmask 523264
    %v137 = vsel %vm135, %v125, 0
    %139 = vmatpush.msra.mxu0 0.0
    %140 = vmatpush.msra.mxu0 0.0
    %141 = vmatpush.msra.mxu0 0.0
    %142 = vmatpush.msra.mxu0 0.0
    %143 = vmatpush.msra.mxu0 0.0
    %144 = vmatpush.msra.mxu0 0.0
    %145 = vmatpush.msra.mxu0 0.0
    %146 = vmatpush.msra.mxu0 0.0
    %147 = vmatpush.msra.mxu0 %v133
    %148 = vmatpush.msra.mxu0 %v132
    %149 = vmatpush.msra.mxu0 %v131
    %150 = vmatpush.msra.mxu0 %v130
    %151 = vmatpush.msra.mxu0 %v129
    %152 = vmatpush.msra.mxu0 %v128
    %153 = vmatpush.msra.mxu0 %v127
    %154 = vmatpush.msra.mxu0 %v126
    %155 = vmatmul.f32.gmra.mxu0 %v137
    %v156 = vpop.f32.mrf.mxu0
    %v157 = vadd.f32 %v134, %v156
    %158 = vdwg.mxu0
    %v159 = vmax.f32 %v157, 0.0
    %v160 = vld [vmem:[#allocation8] sm:$0xff]
    %v161 = vld [vmem:[#allocation8 + $0x8] sm:$0xff]
    %v162 = vld [vmem:[#allocation8 + $0x10] sm:$0xff]
    %v163 = vld [vmem:[#allocation8 + $0x18] sm:$0xff]
    %v164 = vld [vmem:[#allocation8 + $0x20] sm:$0xff]
    %v165 = vld [vmem:[#allocation8 + $0x28] sm:$0xff]
    %v166 = vld [vmem:[#allocation8 + $0x30] sm:$0xff]
    %v167 = vld [vmem:[#allocation8 + $0x38] sm:$0xff]
    %v168 = vperm.slane %v97, 0
    %v170 = vsel %vm135, %v159, 0
    %172 = vmatpush.msra.mxu0 0.0
    %173 = vmatpush.msra.mxu0 0.0
    %174 = vmatpush.msra.mxu0 0.0
    %175 = vmatpush.msra.mxu0 0.0
    %176 = vmatpush.msra.mxu0 0.0
    %177 = vmatpush.msra.mxu0 0.0
    %178 = vmatpush.msra.mxu0 0.0
    %179 = vmatpush.msra.mxu0 0.0
    %180 = vmatpush.msra.mxu0 %v167
    %181 = vmatpush.msra.mxu0 %v166
    %182 = vmatpush.msra.mxu0 %v165
    %183 = vmatpush.msra.mxu0 %v164
    %184 = vmatpush.msra.mxu0 %v163
    %185 = vmatpush.msra.mxu0 %v162
    %186 = vmatpush.msra.mxu0 %v161
    %187 = vmatpush.msra.mxu0 %v160
    %188 = vmatmul.f32.gmra.mxu0 %v170
    %v189 = vpop.f32.mrf.mxu0
    %v190 = vadd.f32 %v168, %v189
    %191 = vdwg.mxu0
    %192 = vst [vmem:[#allocation11] sm:$0xff] %v190
    // Predicated region
    $region42: #{tpu_custom_call.1} parent=1 // pred_check
      _
    $region43: #{tpu_custom_call.1} parent=1 // pred_check_branch
      %194 = sbr.rel (0) target = $region45
    $region44: #{tpu_custom_call.1} parent=1 // pred_region
      %196 = vsyncadd [#allocation4], 96
      %s197 = sshll.u32 [#allocation11], 4
      %s198 = int_to_ptr.vmem [resolvable:$true] %s197
      %s199 = sshll.u32 %s5, 4
      %s200 = int_to_ptr.hbm [resolvable:$true] %s199
      %205 = dma.vmem_to_hbm [thread:$0]  %s198, 32, %s200, [#allocation4], 32, 32, 2
    $region45: #{tpu_custom_call.1} parent=1 // pred_fallthru
      _
    // Predicated region
    $region46: #{tpu_custom_call.1} parent=1 // pred_check
      _
    $region47: #{tpu_custom_call.1} parent=1 // pred_check_branch
      %207 = sbr.rel (0) target = $region49
    $region48: #{tpu_custom_call.1} parent=1 // pred_region
      %209 = dma.done [#allocation4], 128
    $region49: #{tpu_custom_call.1} parent=1 // pred_fallthru
      _
    %210 = vsyncpa [#allocation3], 1
    %211 = vsyncpa [#allocation6], 1
    %212 = vsyncpa [#allocation9], 1
    %213 = vsyncpa [#allocation4], 1

</llo_original>
